<compile_context>
chip_gen: v5e
topology: v5e:2x2
jax: 0.10.0
libtpu: 0.0.40
codegen_flags: <defaults>
</compile_context>

<pallas_src>
import functools
import math

import jax
import jax.numpy as jnp
from jax.experimental import pallas as pl
from jax.experimental.pallas import tpu as pltpu


# ---------------------------------------------------------------------------
# Fused MHA kernel: one grid point = one (batch, query-tile)
# ---------------------------------------------------------------------------
def _mha_kernel(xq_ref, xk_ref, xv_ref, wqkv_ref, bqkv_ref, wo_ref, bo_ref,
                o_ref, k_scr, v_scr, *, h, d_k):
    f32 = jnp.float32

    # --- K/V projections: computed ONCE per batch (first q-tile only) and
    #     cached in VMEM scratch; reused by every subsequent q-tile. ---------
    @pl.when(pl.program_id(1) == 0)
    def _():
        k_scr[...] = (jnp.dot(xk_ref[0], wqkv_ref[1],
                              preferred_element_type=f32) + bqkv_ref[1])
        v_scr[...] = (jnp.dot(xv_ref[0], wqkv_ref[2],
                              preferred_element_type=f32) + bqkv_ref[2])

    # --- Q projection for this q-tile (1/sqrt(d_k) pre-folded into weights) -
    q = jnp.dot(xq_ref[0], wqkv_ref[0], preferred_element_type=f32) + bqkv_ref[0]
    k = k_scr[...]                                  # (S, h*d_k) f32
    v = v_scr[...]                                  # (S, h*d_k) f32

    # --- Per-head attention (static unroll; heads are lane slices) ----------
    ctx_heads = []
    for i in range(h):
        lo = i * d_k
        q_i = q[:, lo:lo + d_k]                     # (tq, d_k)
        k_i = k[:, lo:lo + d_k]                     # (S,  d_k)
        v_i = v[:, lo:lo + d_k]                     # (S,  d_k)

        # trans-B contraction: no materialized k.T
        s = jax.lax.dot_general(q_i, k_i, (((1,), (1,)), ((), ())),
                                preferred_element_type=f32)       # (tq, S)

        # numerically stable softmax, normalization deferred to ctx
        m = jnp.max(s, axis=-1, keepdims=True)
        p = jnp.exp(s - m)
        denom = jnp.sum(p, axis=-1, keepdims=True)

        ctx = jnp.dot(p, v_i, preferred_element_type=f32)         # (tq, d_k)
        inv = pl.reciprocal(denom, approx=True)      # EUP slot (free next to exp)
        inv = inv * (2.0 - denom * inv)              # one Newton step -> ~f32
        ctx_heads.append(ctx * inv)                  # tq*d_k muls, not tq*S

    # --- Single hd-deep output projection ------------------------------------
    ctx_all = jnp.concatenate(ctx_heads, axis=-1)                 # (tq, h*d_k)
    out = jnp.dot(ctx_all, wo_ref[...], preferred_element_type=f32) + bo_ref[...]
    o_ref[0] = out.astype(o_ref.dtype)


def _pick_q_tile(s):
    # 256 is safe for all generations; sweep up to 512 on v6e/v5e (128 MiB VMEM).
    for t in (256, 128, 64, 32, 16, 8):
        if s % t == 0:
            return t
    return s


# ---------------------------------------------------------------------------
# MultiHeadedAttention wrapper (parameter setup + single pallas_call)
# ---------------------------------------------------------------------------
class MultiHeadedAttention:
    """JAX/Pallas port of the PyTorch MultiHeadedAttention forward pass."""

    def __init__(self, h, d_k, d_model, key, dtype=jnp.float32):
        self.h = h
        self.d_k = d_k
        self.d_model = d_model
        hd = h * d_k
        keys = jax.random.split(key, 4)
        s_in = 1.0 / math.sqrt(d_model)     # nn.Linear(d_model, hd) init bound
        s_out = 1.0 / math.sqrt(hd)         # nn.Linear(hd, d_model) init bound
        # Fused Q/K/V weight + bias: one contiguous slab, one DMA, VMEM-resident.
        self.wqkv = jax.random.uniform(keys[0], (3, d_model, hd), dtype, -s_in, s_in)
        self.bqkv = jax.random.uniform(keys[1], (3, 1, hd), dtype, -s_in, s_in)
        # Output projection stored flat: (h*d_k, d_model) for one hd-deep matmul.
        self.wo = jax.random.uniform(keys[2], (hd, d_model), dtype, -s_out, s_out)
        self.bo = jax.random.uniform(keys[3], (1, d_model), dtype, -s_out, s_out)
        # Kernel-side copies with 1/sqrt(d_k) folded into the Q weight/bias
        # (one-time init transform; raw params kept for the reference).
        scale = 1.0 / math.sqrt(d_k)
        self._wqkv_k = self.wqkv.at[0].multiply(scale)
        self._bqkv_k = self.bqkv.at[0].multiply(scale)

    def __call__(self, query, key, value, mask=None):
        if mask is not None:
            raise NotImplementedError("mask path not implemented")  # TODO(synk)
        B, S, d_model = query.shape
        assert d_model == self.d_model
        h, d_k = self.h, self.d_k
        hd = h * d_k
        tq = _pick_q_tile(S)
        grid = (B, S // tq)

        kernel = functools.partial(_mha_kernel, h=h, d_k=d_k)

        return pl.pallas_call(
            kernel,
            out_shape=jax.ShapeDtypeStruct((B, S, d_model), query.dtype),
            grid=grid,
            in_specs=[
                pl.BlockSpec((1, tq, d_model), lambda b, qi: (b, qi, 0)),  # query tile
                pl.BlockSpec((1, S, d_model), lambda b, qi: (b, 0, 0)),    # full keys
                pl.BlockSpec((1, S, d_model), lambda b, qi: (b, 0, 0)),    # full values
                pl.BlockSpec((3, d_model, hd), lambda b, qi: (0, 0, 0)),   # fused Wqkv
                pl.BlockSpec((3, 1, hd), lambda b, qi: (0, 0, 0)),         # fused bqkv
                pl.BlockSpec((hd, d_model), lambda b, qi: (0, 0)),         # Wo (flat)
                pl.BlockSpec((1, d_model), lambda b, qi: (0, 0)),          # bo
            ],
            out_specs=pl.BlockSpec((1, tq, d_model), lambda b, qi: (b, qi, 0)),
            scratch_shapes=[
                pltpu.VMEM((S, hd), jnp.float32),   # projected K (+bias), per batch
                pltpu.VMEM((S, hd), jnp.float32),   # projected V (+bias), per batch
            ],
            compiler_params=pltpu.CompilerParams(
                # batch axis parallel (v7x megacore); q-tile axis arbitrary so the
                # projected-K/V scratch legally carries across q-tiles.
                dimension_semantics=("parallel", "arbitrary"),
                vmem_limit_bytes=48 * 1024 * 1024),
        )(query, key, value, self._wqkv_k, self._bqkv_k, self.wo, self.bo)


# ---------------------------------------------------------------------------
# Pure-JAX reference (built-in sanity check, mirrors the PyTorch module)
# ---------------------------------------------------------------------------
def reference(mha, query, key, value):
    h, d_k, d_model = mha.h, mha.d_k, mha.d_model
    hd = h * d_k
    B, S, _ = query.shape

    def proj(x, w, b):
        y = x @ w + b                                     # (B, S, hd)
        return y.reshape(B, S, h, d_k).transpose(0, 2, 1, 3)

    q = proj(query, mha.wqkv[0], mha.bqkv[0, 0])
    k = proj(key, mha.wqkv[1], mha.bqkv[1, 0])
    v = proj(value, mha.wqkv[2], mha.bqkv[2, 0])
    s = jnp.einsum("bhqd,bhkd->bhqk", q, k) / math.sqrt(d_k)
    p = jax.nn.softmax(s, axis=-1)
    x = jnp.einsum("bhqk,bhkd->bhqd", p, v)
    x = x.transpose(0, 2, 1, 3).reshape(B, S, hd)
    return x @ mha.wo + mha.bo[0]


# ---------------------------------------------------------------------------
if __name__ == "__main__":
    B, S, d_model = 2, 8, 32
    h, d_k = 4, 8

    root = jax.random.PRNGKey(0)
    k_param, kq, kk, kv = jax.random.split(root, 4)

    mha = MultiHeadedAttention(h=h, d_k=d_k, d_model=d_model, key=k_param)

    query = jax.random.normal(kq, (B, S, d_model), jnp.float32)
    key = jax.random.normal(kk, (B, S, d_model), jnp.float32)
    value = jax.random.normal(kv, (B, S, d_model), jnp.float32)

    out = jax.block_until_ready(mha(query, key, value))
    ref = jax.block_until_ready(reference(mha, query, key, value))

    assert out.shape == (B, S, d_model)
    err = jnp.max(jnp.abs(out - ref))
    assert jnp.allclose(out, ref, atol=2e-4, rtol=2e-4), f"mismatch vs reference (max abs err {err})"

    print("KERNEL_OK")
</pallas_src>

<mosaic_0001>
module attributes {stable_mosaic.version = 11 : i64} {
  func.func @_mha_kernel(%arg0: i32, %arg1: i32, %arg2: memref<1x8x32xf32, #tpu.memory_space<vmem>>, %arg3: memref<1x8x32xf32, #tpu.memory_space<vmem>>, %arg4: memref<1x8x32xf32, #tpu.memory_space<vmem>>, %arg5: memref<3x32x32xf32, #tpu.memory_space<vmem>>, %arg6: memref<3x1x32xf32, #tpu.memory_space<vmem>>, %arg7: memref<32x32xf32, #tpu.memory_space<vmem>>, %arg8: memref<1x32xf32, #tpu.memory_space<vmem>>, %arg9: memref<1x8x32xf32, #tpu.memory_space<vmem>>, %arg10: memref<8x32xf32, #tpu.memory_space<vmem>>, %arg11: memref<8x32xf32, #tpu.memory_space<vmem>>) attributes {dimension_semantics = [#tpu.dimension_semantics<parallel>, #tpu.dimension_semantics<arbitrary>], iteration_bounds = array<i64: 2, 1>, scalar_prefetch = 0 : i64, scratch_operands = 2 : i64, tpu.core_type = #tpu.core_type<tc>, window_params = [{transform_indices = @transform_0, window_bounds = array<i64: 1, 8, 32>}, {transform_indices = @transform_1, window_bounds = array<i64: 1, 8, 32>}, {transform_indices = @transform_2, window_bounds = array<i64: 1, 8, 32>}, {pipeline_mode = #tpu.pipeline_mode<synchronous>, transform_indices = @transform_3, window_bounds = array<i64: 3, 32, 32>}, {pipeline_mode = #tpu.pipeline_mode<synchronous>, transform_indices = @transform_4, window_bounds = array<i64: 3, 1, 32>}, {pipeline_mode = #tpu.pipeline_mode<synchronous>, transform_indices = @transform_5, window_bounds = array<i64: 32, 32>}, {pipeline_mode = #tpu.pipeline_mode<synchronous>, transform_indices = @transform_6, window_bounds = array<i64: 1, 32>}, {transform_indices = @transform_7, window_bounds = array<i64: 1, 8, 32>}]} {
    %c0_i32 = arith.constant 0 : i32
    %0 = arith.cmpi eq, %arg1, %c0_i32 : i32
    %1 = arith.extui %0 : i1 to i32
    %c0_i32_0 = arith.constant 0 : i32
    %2 = arith.cmpi ne, %1, %c0_i32_0 : i32
    scf.if %2 {
      %c0_41 = arith.constant 0 : index
      %c0_42 = arith.constant 0 : index
      %c0_43 = arith.constant 0 : index
      %99 = vector.load %arg3[%c0_41, %c0_42, %c0_43] : memref<1x8x32xf32, #tpu.memory_space<vmem>>, vector<1x8x32xf32>
      %100 = vector.shape_cast %99 : vector<1x8x32xf32> to vector<8x32xf32>
      %c1 = arith.constant 1 : index
      %c0_44 = arith.constant 0 : index
      %c0_45 = arith.constant 0 : index
      %101 = vector.load %arg5[%c1, %c0_44, %c0_45] : memref<3x32x32xf32, #tpu.memory_space<vmem>>, vector<1x32x32xf32>
      %102 = vector.shape_cast %101 : vector<1x32x32xf32> to vector<32x32xf32>
      %cst_46 = arith.constant dense<0.000000e+00> : vector<8x32xf32>
      %103 = tpu.matmul %100, %102, %cst_46 {dimension_numbers = #tpu.dot_dimension_numbers<[1], [0], [0], [1], [0, 0, 1, 1], [], []>} : vector<8x32xf32>, vector<32x32xf32>, vector<8x32xf32> -> vector<8x32xf32>
      %c1_47 = arith.constant 1 : index
      %c0_48 = arith.constant 0 : index
      %c0_49 = arith.constant 0 : index
      %104 = vector.load %arg6[%c1_47, %c0_48, %c0_49] : memref<3x1x32xf32, #tpu.memory_space<vmem>>, vector<1x1x32xf32>
      %105 = vector.shape_cast %104 : vector<1x1x32xf32> to vector<1x32xf32>
      %106 = vector.broadcast %105 : vector<1x32xf32> to vector<8x32xf32>
      %107 = arith.addf %103, %106 : vector<8x32xf32>
      %c0_50 = arith.constant 0 : index
      %c0_51 = arith.constant 0 : index
      %108 = vector.load %arg10[%c0_50, %c0_51] : memref<8x32xf32, #tpu.memory_space<vmem>>, vector<8x32xf32>
      tpu.vector_store %arg10[%c0_50, %c0_51], %107 {strides = array<i32>} : memref<8x32xf32, #tpu.memory_space<vmem>>, vector<8x32xf32>,
      %c0_52 = arith.constant 0 : index
      %c0_53 = arith.constant 0 : index
      %c0_54 = arith.constant 0 : index
      %109 = vector.load %arg4[%c0_52, %c0_53, %c0_54] : memref<1x8x32xf32, #tpu.memory_space<vmem>>, vector<1x8x32xf32>
      %110 = vector.shape_cast %109 : vector<1x8x32xf32> to vector<8x32xf32>
      %c2 = arith.constant 2 : index
      %c0_55 = arith.constant 0 : index
      %c0_56 = arith.constant 0 : index
      %111 = vector.load %arg5[%c2, %c0_55, %c0_56] : memref<3x32x32xf32, #tpu.memory_space<vmem>>, vector<1x32x32xf32>
      %112 = vector.shape_cast %111 : vector<1x32x32xf32> to vector<32x32xf32>
      %cst_57 = arith.constant dense<0.000000e+00> : vector<8x32xf32>
      %113 = tpu.matmul %110, %112, %cst_57 {dimension_numbers = #tpu.dot_dimension_numbers<[1], [0], [0], [1], [0, 0, 1, 1], [], []>} : vector<8x32xf32>, vector<32x32xf32>, vector<8x32xf32> -> vector<8x32xf32>
      %c2_58 = arith.constant 2 : index
      %c0_59 = arith.constant 0 : index
      %c0_60 = arith.constant 0 : index
      %114 = vector.load %arg6[%c2_58, %c0_59, %c0_60] : memref<3x1x32xf32, #tpu.memory_space<vmem>>, vector<1x1x32xf32>
      %115 = vector.shape_cast %114 : vector<1x1x32xf32> to vector<1x32xf32>
      %116 = vector.broadcast %115 : vector<1x32xf32> to vector<8x32xf32>
      %117 = arith.addf %113, %116 : vector<8x32xf32>
      %c0_61 = arith.constant 0 : index
      %c0_62 = arith.constant 0 : index
      %118 = vector.load %arg11[%c0_61, %c0_62] : memref<8x32xf32, #tpu.memory_space<vmem>>, vector<8x32xf32>
      tpu.vector_store %arg11[%c0_61, %c0_62], %117 {strides = array<i32>} : memref<8x32xf32, #tpu.memory_space<vmem>>, vector<8x32xf32>,
    } else {
    }
    %c0 = arith.constant 0 : index
    %c0_1 = arith.constant 0 : index
    %c0_2 = arith.constant 0 : index
    %3 = vector.load %arg2[%c0, %c0_1, %c0_2] : memref<1x8x32xf32, #tpu.memory_space<vmem>>, vector<1x8x32xf32>
    %4 = vector.shape_cast %3 : vector<1x8x32xf32> to vector<8x32xf32>
    %c0_3 = arith.constant 0 : index
    %c0_4 = arith.constant 0 : index
    %c0_5 = arith.constant 0 : index
    %5 = vector.load %arg5[%c0_3, %c0_4, %c0_5] : memref<3x32x32xf32, #tpu.memory_space<vmem>>, vector<1x32x32xf32>
    %6 = vector.shape_cast %5 : vector<1x32x32xf32> to vector<32x32xf32>
    %cst = arith.constant dense<0.000000e+00> : vector<8x32xf32>
    %7 = tpu.matmul %4, %6, %cst {dimension_numbers = #tpu.dot_dimension_numbers<[1], [0], [0], [1], [0, 0, 1, 1], [], []>} : vector<8x32xf32>, vector<32x32xf32>, vector<8x32xf32> -> vector<8x32xf32>
    %c0_6 = arith.constant 0 : index
    %c0_7 = arith.constant 0 : index
    %c0_8 = arith.constant 0 : index
    %8 = vector.load %arg6[%c0_6, %c0_7, %c0_8] : memref<3x1x32xf32, #tpu.memory_space<vmem>>, vector<1x1x32xf32>
    %9 = vector.shape_cast %8 : vector<1x1x32xf32> to vector<1x32xf32>
    %10 = vector.broadcast %9 : vector<1x32xf32> to vector<8x32xf32>
    %11 = arith.addf %7, %10 : vector<8x32xf32>
    %c0_9 = arith.constant 0 : index
    %c0_10 = arith.constant 0 : index
    %12 = vector.load %arg10[%c0_9, %c0_10] : memref<8x32xf32, #tpu.memory_space<vmem>>, vector<8x32xf32>
    %c0_11 = arith.constant 0 : index
    %c0_12 = arith.constant 0 : index
    %13 = vector.load %arg11[%c0_11, %c0_12] : memref<8x32xf32, #tpu.memory_space<vmem>>, vector<8x32xf32>
    %14 = vector.extract_strided_slice %11 {offsets = [0, 0], sizes = [8, 8], strides = [1, 1]} : vector<8x32xf32> to vector<8x8xf32>
    %15 = vector.extract_strided_slice %12 {offsets = [0, 0], sizes = [8, 8], strides = [1, 1]} : vector<8x32xf32> to vector<8x8xf32>
    %16 = vector.extract_strided_slice %13 {offsets = [0, 0], sizes = [8, 8], strides = [1, 1]} : vector<8x32xf32> to vector<8x8xf32>
    %cst_13 = arith.constant dense<0.000000e+00> : vector<8x8xf32>
    %17 = tpu.matmul %14, %15, %cst_13 {dimension_numbers = #tpu.dot_dimension_numbers<[1], [1], [0], [0], [0, 0, 1, 0], [], []>} : vector<8x8xf32>, vector<8x8xf32>, vector<8x8xf32> -> vector<8x8xf32>
    %cst_14 = arith.constant dense<0xFF800000> : vector<8xf32>
    %18 = vector.multi_reduction <maximumf>, %17, %cst_14 [1] : vector<8x8xf32> to vector<8xf32>
    %19 = vector.shape_cast %18 : vector<8xf32> to vector<8x1xf32>
    %20 = vector.broadcast %19 : vector<8x1xf32> to vector<8x8xf32>
    %21 = arith.subf %17, %20 : vector<8x8xf32>
    %22 = math.exp %21 : vector<8x8xf32>
    %cst_15 = arith.constant dense<0.000000e+00> : vector<8xf32>
    %23 = vector.multi_reduction <add>, %22, %cst_15 [1] : vector<8x8xf32> to vector<8xf32>
    %24 = vector.shape_cast %23 : vector<8xf32> to vector<8x1xf32>
    %cst_16 = arith.constant dense<0.000000e+00> : vector<8x8xf32>
    %25 = tpu.matmul %22, %16, %cst_16 {dimension_numbers = #tpu.dot_dimension_numbers<[1], [0], [0], [1], [0, 0, 1, 1], [], []>} : vector<8x8xf32>, vector<8x8xf32>, vector<8x8xf32> -> vector<8x8xf32>
    %26 = tpu.reciprocal %24 {approx = true} : vector<8x1xf32> -> vector<8x1xf32>
    %27 = arith.mulf %24, %26 : vector<8x1xf32>
    %cst_17 = arith.constant 2.000000e+00 : f32
    %28 = vector.broadcast %cst_17 : f32 to vector<8x1xf32>
    %29 = arith.subf %28, %27 : vector<8x1xf32>
    %30 = arith.mulf %26, %29 : vector<8x1xf32>
    %31 = vector.broadcast %30 : vector<8x1xf32> to vector<8x8xf32>
    %32 = arith.mulf %25, %31 : vector<8x8xf32>
    %33 = vector.extract_strided_slice %11 {offsets = [0, 8], sizes = [8, 8], strides = [1, 1]} : vector<8x32xf32> to vector<8x8xf32>
    %34 = vector.extract_strided_slice %12 {offsets = [0, 8], sizes = [8, 8], strides = [1, 1]} : vector<8x32xf32> to vector<8x8xf32>
    %35 = vector.extract_strided_slice %13 {offsets = [0, 8], sizes = [8, 8], strides = [1, 1]} : vector<8x32xf32> to vector<8x8xf32>
    %cst_18 = arith.constant dense<0.000000e+00> : vector<8x8xf32>
    %36 = tpu.matmul %33, %34, %cst_18 {dimension_numbers = #tpu.dot_dimension_numbers<[1], [1], [0], [0], [0, 0, 1, 0], [], []>} : vector<8x8xf32>, vector<8x8xf32>, vector<8x8xf32> -> vector<8x8xf32>
    %cst_19 = arith.constant dense<0xFF800000> : vector<8xf32>
    %37 = vector.multi_reduction <maximumf>, %36, %cst_19 [1] : vector<8x8xf32> to vector<8xf32>
    %38 = vector.shape_cast %37 : vector<8xf32> to vector<8x1xf32>
    %39 = vector.broadcast %38 : vector<8x1xf32> to vector<8x8xf32>
    %40 = arith.subf %36, %39 : vector<8x8xf32>
    %41 = math.exp %40 : vector<8x8xf32>
    %cst_20 = arith.constant dense<0.000000e+00> : vector<8xf32>
    %42 = vector.multi_reduction <add>, %41, %cst_20 [1] : vector<8x8xf32> to vector<8xf32>
    %43 = vector.shape_cast %42 : vector<8xf32> to vector<8x1xf32>
    %cst_21 = arith.constant dense<0.000000e+00> : vector<8x8xf32>
    %44 = tpu.matmul %41, %35, %cst_21 {dimension_numbers = #tpu.dot_dimension_numbers<[1], [0], [0], [1], [0, 0, 1, 1], [], []>} : vector<8x8xf32>, vector<8x8xf32>, vector<8x8xf32> -> vector<8x8xf32>
    %45 = tpu.reciprocal %43 {approx = true} : vector<8x1xf32> -> vector<8x1xf32>
    %46 = arith.mulf %43, %45 : vector<8x1xf32>
    %cst_22 = arith.constant 2.000000e+00 : f32
    %47 = vector.broadcast %cst_22 : f32 to vector<8x1xf32>
    %48 = arith.subf %47, %46 : vector<8x1xf32>
    %49 = arith.mulf %45, %48 : vector<8x1xf32>
    %50 = vector.broadcast %49 : vector<8x1xf32> to vector<8x8xf32>
    %51 = arith.mulf %44, %50 : vector<8x8xf32>
    %52 = vector.extract_strided_slice %11 {offsets = [0, 16], sizes = [8, 8], strides = [1, 1]} : vector<8x32xf32> to vector<8x8xf32>
    %53 = vector.extract_strided_slice %12 {offsets = [0, 16], sizes = [8, 8], strides = [1, 1]} : vector<8x32xf32> to vector<8x8xf32>
    %54 = vector.extract_strided_slice %13 {offsets = [0, 16], sizes = [8, 8], strides = [1, 1]} : vector<8x32xf32> to vector<8x8xf32>
    %cst_23 = arith.constant dense<0.000000e+00> : vector<8x8xf32>
    %55 = tpu.matmul %52, %53, %cst_23 {dimension_numbers = #tpu.dot_dimension_numbers<[1], [1], [0], [0], [0, 0, 1, 0], [], []>} : vector<8x8xf32>, vector<8x8xf32>, vector<8x8xf32> -> vector<8x8xf32>
    %cst_24 = arith.constant dense<0xFF800000> : vector<8xf32>
    %56 = vector.multi_reduction <maximumf>, %55, %cst_24 [1] : vector<8x8xf32> to vector<8xf32>
    %57 = vector.shape_cast %56 : vector<8xf32> to vector<8x1xf32>
    %58 = vector.broadcast %57 : vector<8x1xf32> to vector<8x8xf32>
    %59 = arith.subf %55, %58 : vector<8x8xf32>
    %60 = math.exp %59 : vector<8x8xf32>
    %cst_25 = arith.constant dense<0.000000e+00> : vector<8xf32>
    %61 = vector.multi_reduction <add>, %60, %cst_25 [1] : vector<8x8xf32> to vector<8xf32>
    %62 = vector.shape_cast %61 : vector<8xf32> to vector<8x1xf32>
    %cst_26 = arith.constant dense<0.000000e+00> : vector<8x8xf32>
    %63 = tpu.matmul %60, %54, %cst_26 {dimension_numbers = #tpu.dot_dimension_numbers<[1], [0], [0], [1], [0, 0, 1, 1], [], []>} : vector<8x8xf32>, vector<8x8xf32>, vector<8x8xf32> -> vector<8x8xf32>
    %64 = tpu.reciprocal %62 {approx = true} : vector<8x1xf32> -> vector<8x1xf32>
    %65 = arith.mulf %62, %64 : vector<8x1xf32>
    %cst_27 = arith.constant 2.000000e+00 : f32
    %66 = vector.broadcast %cst_27 : f32 to vector<8x1xf32>
    %67 = arith.subf %66, %65 : vector<8x1xf32>
    %68 = arith.mulf %64, %67 : vector<8x1xf32>
    %69 = vector.broadcast %68 : vector<8x1xf32> to vector<8x8xf32>
    %70 = arith.mulf %63, %69 : vector<8x8xf32>
    %71 = vector.extract_strided_slice %11 {offsets = [0, 24], sizes = [8, 8], strides = [1, 1]} : vector<8x32xf32> to vector<8x8xf32>
    %72 = vector.extract_strided_slice %12 {offsets = [0, 24], sizes = [8, 8], strides = [1, 1]} : vector<8x32xf32> to vector<8x8xf32>
    %73 = vector.extract_strided_slice %13 {offsets = [0, 24], sizes = [8, 8], strides = [1, 1]} : vector<8x32xf32> to vector<8x8xf32>
    %cst_28 = arith.constant dense<0.000000e+00> : vector<8x8xf32>
    %74 = tpu.matmul %71, %72, %cst_28 {dimension_numbers = #tpu.dot_dimension_numbers<[1], [1], [0], [0], [0, 0, 1, 0], [], []>} : vector<8x8xf32>, vector<8x8xf32>, vector<8x8xf32> -> vector<8x8xf32>
    %cst_29 = arith.constant dense<0xFF800000> : vector<8xf32>
    %75 = vector.multi_reduction <maximumf>, %74, %cst_29 [1] : vector<8x8xf32> to vector<8xf32>
    %76 = vector.shape_cast %75 : vector<8xf32> to vector<8x1xf32>
    %77 = vector.broadcast %76 : vector<8x1xf32> to vector<8x8xf32>
    %78 = arith.subf %74, %77 : vector<8x8xf32>
    %79 = math.exp %78 : vector<8x8xf32>
    %cst_30 = arith.constant dense<0.000000e+00> : vector<8xf32>
    %80 = vector.multi_reduction <add>, %79, %cst_30 [1] : vector<8x8xf32> to vector<8xf32>
    %81 = vector.shape_cast %80 : vector<8xf32> to vector<8x1xf32>
    %cst_31 = arith.constant dense<0.000000e+00> : vector<8x8xf32>
    %82 = tpu.matmul %79, %73, %cst_31 {dimension_numbers = #tpu.dot_dimension_numbers<[1], [0], [0], [1], [0, 0, 1, 1], [], []>} : vector<8x8xf32>, vector<8x8xf32>, vector<8x8xf32> -> vector<8x8xf32>
    %83 = tpu.reciprocal %81 {approx = true} : vector<8x1xf32> -> vector<8x1xf32>
    %84 = arith.mulf %81, %83 : vector<8x1xf32>
    %cst_32 = arith.constant 2.000000e+00 : f32
    %85 = vector.broadcast %cst_32 : f32 to vector<8x1xf32>
    %86 = arith.subf %85, %84 : vector<8x1xf32>
    %87 = arith.mulf %83, %86 : vector<8x1xf32>
    %88 = vector.broadcast %87 : vector<8x1xf32> to vector<8x8xf32>
    %89 = arith.mulf %82, %88 : vector<8x8xf32>
    %90 = tpu.concatenate %32, %51, %70, %89 in 1 : vector<8x8xf32>, vector<8x8xf32>, vector<8x8xf32>, vector<8x8xf32> -> vector<8x32xf32>
    %c0_33 = arith.constant 0 : index
    %c0_34 = arith.constant 0 : index
    %91 = vector.load %arg7[%c0_33, %c0_34] : memref<32x32xf32, #tpu.memory_space<vmem>>, vector<32x32xf32>
    %cst_35 = arith.constant dense<0.000000e+00> : vector<8x32xf32>
    %92 = tpu.matmul %90, %91, %cst_35 {dimension_numbers = #tpu.dot_dimension_numbers<[1], [0], [0], [1], [0, 0, 1, 1], [], []>} : vector<8x32xf32>, vector<32x32xf32>, vector<8x32xf32> -> vector<8x32xf32>
    %c0_36 = arith.constant 0 : index
    %c0_37 = arith.constant 0 : index
    %93 = vector.load %arg8[%c0_36, %c0_37] : memref<1x32xf32, #tpu.memory_space<vmem>>, vector<1x32xf32>
    %94 = vector.broadcast %93 : vector<1x32xf32> to vector<8x32xf32>
    %95 = arith.addf %92, %94 : vector<8x32xf32>
    %c0_38 = arith.constant 0 : index
    %c0_39 = arith.constant 0 : index
    %c0_40 = arith.constant 0 : index
    %96 = vector.load %arg9[%c0_38, %c0_39, %c0_40] : memref<1x8x32xf32, #tpu.memory_space<vmem>>, vector<1x8x32xf32>
    %97 = vector.shape_cast %96 : vector<1x8x32xf32> to vector<8x32xf32>
    %98 = vector.shape_cast %95 : vector<8x32xf32> to vector<1x8x32xf32>
    tpu.vector_store %arg9[%c0_38, %c0_39, %c0_40], %98 {strides = array<i32>} : memref<1x8x32xf32, #tpu.memory_space<vmem>>, vector<1x8x32xf32>,
    return
  }
  func.func @transform_0(%arg0: i32, %arg1: i32) -> (i32, i32, i32) {
    %c0_i32 = arith.constant 0 : i32
    %c0_i32_0 = arith.constant 0 : i32
    return %arg0, %arg1, %c0_i32 : i32, i32, i32
  }
  func.func @transform_1(%arg0: i32, %arg1: i32) -> (i32, i32, i32) {
    %c0_i32 = arith.constant 0 : i32
    %c0_i32_0 = arith.constant 0 : i32
    %c0_i32_1 = arith.constant 0 : i32
    return %arg0, %c0_i32, %c0_i32_0 : i32, i32, i32
  }
  func.func @transform_2(%arg0: i32, %arg1: i32) -> (i32, i32, i32) {
    %c0_i32 = arith.constant 0 : i32
    %c0_i32_0 = arith.constant 0 : i32
    %c0_i32_1 = arith.constant 0 : i32
    return %arg0, %c0_i32, %c0_i32_0 : i32, i32, i32
  }
  func.func @transform_3(%arg0: i32, %arg1: i32) -> (i32, i32, i32) {
    %c0_i32 = arith.constant 0 : i32
    %c0_i32_0 = arith.constant 0 : i32
    %c0_i32_1 = arith.constant 0 : i32
    %c0_i32_2 = arith.constant 0 : i32
    return %c0_i32, %c0_i32_0, %c0_i32_1 : i32, i32, i32
  }
  func.func @transform_4(%arg0: i32, %arg1: i32) -> (i32, i32, i32) {
    %c0_i32 = arith.constant 0 : i32
    %c0_i32_0 = arith.constant 0 : i32
    %c0_i32_1 = arith.constant 0 : i32
    %c0_i32_2 = arith.constant 0 : i32
    return %c0_i32, %c0_i32_0, %c0_i32_1 : i32, i32, i32
  }
  func.func @transform_5(%arg0: i32, %arg1: i32) -> (i32, i32) {
    %c0_i32 = arith.constant 0 : i32
    %c0_i32_0 = arith.constant 0 : i32
    %c0_i32_1 = arith.constant 0 : i32
    return %c0_i32, %c0_i32_0 : i32, i32
  }
  func.func @transform_6(%arg0: i32, %arg1: i32) -> (i32, i32) {
    %c0_i32 = arith.constant 0 : i32
    %c0_i32_0 = arith.constant 0 : i32
    %c0_i32_1 = arith.constant 0 : i32
    return %c0_i32, %c0_i32_0 : i32, i32
  }
  func.func @transform_7(%arg0: i32, %arg1: i32) -> (i32, i32, i32) {
    %c0_i32 = arith.constant 0 : i32
    %c0_i32_0 = arith.constant 0 : i32
    return %arg0, %arg1, %c0_i32 : i32, i32, i32
  }
}

</mosaic_0001>

<llo_original>
// kernel: tpu_custom_call.1
$region0: #{tpu_custom_call.1}
  #allocation0 [shape = 'u32[]', space=smem, size = 0x4, offset = 0x4, fixed_abs, tag = 'smem constant byte address 0x4 - core index']
  #allocation1 [shape = 'u32[72,128]{1,0:T(1,128)}', space=vmem, size = 0x9000, scoped, tag = 'internal scratch']
  #allocation2 [shape = 'f32[8,32]{1,0:T(8,128)}', space=vmem, size = 0x1000, scoped, tag = 'scratch operand']
  #allocation3 [shape = 'f32[8,32]{1,0:T(8,128)}', space=vmem, size = 0x1000, scoped, tag = 'scratch operand']
  %s0 = inlined_call_operand.hbm [shape: f32[2,8,32], index: 0, kind: input, shape index: {}]
  %s1 = inlined_call_operand.hbm [shape: f32[2,8,32], index: 1, kind: input, shape index: {}]
  %s2 = inlined_call_operand.hbm [shape: f32[2,8,32], index: 2, kind: input, shape index: {}]
  %s3 = inlined_call_operand.hbm [shape: f32[3,32,32], index: 3, kind: input, shape index: {}]
  %s4 = inlined_call_operand.vmem [shape: f32[3,1,32], index: 4, kind: input, shape index: {}]
  %s5 = inlined_call_operand.hbm [shape: f32[32,32], index: 5, kind: input, shape index: {}]
  %s6 = inlined_call_operand.vmem [shape: f32[1,32], index: 6, kind: input, shape index: {}]
  %s7 = inlined_call_operand.hbm [shape: f32[2,8,32], index: 7, kind: output, shape index: {}]
  %s8 = sld [smem:[#allocation0]]
  $region85: #{tpu_custom_call.1} parent=0
    _
  %s10 = ssub.s32 1, %s8
  %s11 = scalar_select 0, %s10, %s8
  $region1: #{tpu_custom_call.1} parent=0
    #allocation4 [shape = 'u8[8192]{0}', space=vmem, size = 0x2000, scoped, tag = 'input window, operand 0']
    #allocation5 [shape = 's32[2]{0}', space=sflag, size = 0x8, scoped, tag = 'scoped memory for tpu_custom_call.1']
    #allocation6 [shape = 's32[2]{0}', space=sflag, size = 0x8, scoped, tag = 'scoped memory for tpu_custom_call.1']
    #allocation7 [shape = 'u8[8192]{0}', space=vmem, size = 0x2000, scoped, tag = 'input window, operand 1']
    #allocation8 [shape = 's32[2]{0}', space=sflag, size = 0x8, scoped, tag = 'scoped memory for tpu_custom_call.1']
    #allocation9 [shape = 'u8[8192]{0}', space=vmem, size = 0x2000, scoped, tag = 'input window, operand 2']
    #allocation10 [shape = 'u8[49152]{0}', space=vmem, size = 0xc000, scoped, tag = 'input window, operand 3, single buffered']
    #allocation11 [shape = 's32[1]{0}', space=sflag, size = 0x4, scoped, tag = 'scoped memory for tpu_custom_call.1']
    #allocation12 [shape = 'u8[16384]{0}', space=vmem, size = 0x4000, scoped, tag = 'input window, operand 5, single buffered']
    #allocation13 [shape = 'u8[8192]{0}', space=vmem, size = 0x2000, scoped, tag = 'output window, operand 0']
    %12 = vsyncpa [#allocation5], 0
    %s13 = scalar_lea.sflag [#allocation5], 1
    %14 = vsyncpa %s13, 0
    %15 = vsyncpa [#allocation8], 0
    %s16 = scalar_lea.sflag [#allocation8], 1
    %17 = vsyncpa %s16, 0
    %18 = vsyncpa [#allocation11], 0
    %19 = vsyncpa [#allocation6], 0
    %s20 = scalar_lea.sflag [#allocation6], 1
    %21 = vsyncpa %s20, 0
    loop: start=0, step=1, limit=4
    $region2: #{tpu_custom_call.1} parent=1 // loop_pre_header
      _
    $region3: #{tpu_custom_call.1} parent=1 // loop_header
      %s23 = sphi 0, %s27
      %p24 = scmp.ge.s32.totalorder %s23, 4
      %s30 = sphi 0, %s42
      %s31 = sphi 0, %s38
      %s32 = sphi 0, %s30
      %s33 = sphi 0, %s31
      %s34 = sphi 0, %s32
      %s35 = sphi 0, %s33
      %s47 = sphi 0, %s49
      %s50 = sphi 0, %s47
      %s51 = sphi 0, %s50
      %s67 = sphi 0, %s51
      %s73 = sphi 0, %s75
      %s76 = sphi 0, %s73
      %s77 = sphi 0, %s76
      %s93 = sphi 0, %s77
      %s99 = sphi 0, %s101
      %s102 = sphi 0, %s99
      %s103 = sphi 0, %s102
      %s119 = sphi 0, %s103
      %s123 = sphi 0, %s123
      %s125 = sphi 0, %s123
      %s126 = sphi 0, %s125
      %s140 = sphi 0, %s126
      %s144 = sphi 0, %s144
      %s146 = sphi 0, %s144
      %s147 = sphi 0, %s146
      %s161 = sphi 0, %s147
      %s165 = sphi 0, %s165
      %s167 = sphi 0, %s165
      %s168 = sphi 0, %s167
      %s182 = sphi 0, %s168
      %s186 = sphi 0, %s186
      %s188 = sphi 0, %s186
      %s189 = sphi 0, %s188
      %s203 = sphi 0, %s189
      %s211 = sphi 0, %s213
      %s214 = sphi 0, %s211
      %s215 = sphi 0, %s214
      %s231 = sphi 0, %s215
    $region4: #{tpu_custom_call.1} parent=1 // loop_header_branch
      %26 = sbr.rel (%p24) target = $region8
    $region5: #{tpu_custom_call.1} parent=1 // loop_body
      %s28 = ssub.s32 %s23, 1
      %s29 = ssub.s32 %s23, 2
      %s36 = sadd.s32 1, %s31
      %p37 = scmp.ge.s32.totalorder %s36, 1
      %s38 = scalar_select %p37, 0, %s36
      %s39 = sadd.s32 1, %s30
      %s40 = scalar_select %p37, %s39, %s30
      %p41 = scmp.ge.s32.totalorder %s40, 2
      %s42 = scalar_select %p41, 0, %s40
      %s43 = ssub.s32 %s30, %s42
      %s44 = ssub.s32 %s31, %s38
      %s45 = sor.u32 %s43, %s44
      %p46 = scmp.eq.s32.totalorder %s45, 0
      %s48 = sadd.s32 %s47, 1
      %s49 = scalar_select %p46, %s47, %s48
      %p52 = pneg %p46
      %p53 = scmp.eq.s32.totalorder %s23, 1
      %p54 = por %p52, %p53
      %p55 = scmp.ne.s32.totalorder %s47, %s50
      %p56 = scmp.eq.s32.totalorder %s23, 0
      %p57 = por %p55, %p56
      %p58 = scmp.ne.s32.totalorder %s47, %s50
      %p59 = scmp.eq.s32.totalorder %s28, 1
      %p60 = por %p58, %p59
      %p61 = scmp.ne.s32.totalorder %s50, %s51
      %p62 = scmp.eq.s32.totalorder %s28, 0
      %p63 = por %p61, %p62
      %p64 = scmp.ne.s32.totalorder %s50, %s51
      %p65 = scmp.eq.s32.totalorder %s29, 1
      %p66 = por %p64, %p65
      %p68 = scmp.ne.s32.totalorder %s51, %s67
      %p69 = scmp.eq.s32.totalorder %s29, 0
      %p70 = por %p68, %p69
      %s71 = ssub.s32 %s30, %s42
      %p72 = scmp.eq.s32.totalorder %s71, 0
      %s74 = sadd.s32 %s73, 1
      %s75 = scalar_select %p72, %s73, %s74
      %p78 = pneg %p72
      %p79 = scmp.eq.s32.totalorder %s23, 1
      %p80 = por %p78, %p79
      %p81 = scmp.ne.s32.totalorder %s73, %s76
      %p82 = scmp.eq.s32.totalorder %s23, 0
      %p83 = por %p81, %p82
      %p84 = scmp.ne.s32.totalorder %s73, %s76
      %p85 = scmp.eq.s32.totalorder %s28, 1
      %p86 = por %p84, %p85
      %p87 = scmp.ne.s32.totalorder %s76, %s77
      %p88 = scmp.eq.s32.totalorder %s28, 0
      %p89 = por %p87, %p88
      %p90 = scmp.ne.s32.totalorder %s76, %s77
      %p91 = scmp.eq.s32.totalorder %s29, 1
      %p92 = por %p90, %p91
      %p94 = scmp.ne.s32.totalorder %s77, %s93
      %p95 = scmp.eq.s32.totalorder %s29, 0
      %p96 = por %p94, %p95
      %s97 = ssub.s32 %s30, %s42
      %p98 = scmp.eq.s32.totalorder %s97, 0
      %s100 = sadd.s32 %s99, 1
      %s101 = scalar_select %p98, %s99, %s100
      %p104 = pneg %p98
      %p105 = scmp.eq.s32.totalorder %s23, 1
      %p106 = por %p104, %p105
      %p107 = scmp.ne.s32.totalorder %s99, %s102
      %p108 = scmp.eq.s32.totalorder %s23, 0
      %p109 = por %p107, %p108
      %p110 = scmp.ne.s32.totalorder %s99, %s102
      %p111 = scmp.eq.s32.totalorder %s28, 1
      %p112 = por %p110, %p111
      %p113 = scmp.ne.s32.totalorder %s102, %s103
      %p114 = scmp.eq.s32.totalorder %s28, 0
      %p115 = por %p113, %p114
      %p116 = scmp.ne.s32.totalorder %s102, %s103
      %p117 = scmp.eq.s32.totalorder %s29, 1
      %p118 = por %p116, %p117
      %p120 = scmp.ne.s32.totalorder %s103, %s119
      %p121 = scmp.eq.s32.totalorder %s29, 0
      %p122 = por %p120, %p121
      %s124 = sadd.s32 %s123, 1
      %p127 = scmp.eq.s32.totalorder %s23, 1
      %p128 = scmp.ne.s32.totalorder %s123, %s125
      %p129 = scmp.eq.s32.totalorder %s23, 0
      %p130 = por %p128, %p129
      %p131 = scmp.ne.s32.totalorder %s123, %s125
      %p132 = scmp.eq.s32.totalorder %s28, 1
      %p133 = por %p131, %p132
      %p134 = scmp.ne.s32.totalorder %s125, %s126
      %p135 = scmp.eq.s32.totalorder %s28, 0
      %p136 = por %p134, %p135
      %p137 = scmp.ne.s32.totalorder %s125, %s126
      %p138 = scmp.eq.s32.totalorder %s29, 1
      %p139 = por %p137, %p138
      %p141 = scmp.ne.s32.totalorder %s126, %s140
      %p142 = scmp.eq.s32.totalorder %s29, 0
      %p143 = por %p141, %p142
      %s145 = sadd.s32 %s144, 1
      %p148 = scmp.eq.s32.totalorder %s23, 1
      %p149 = scmp.ne.s32.totalorder %s144, %s146
      %p150 = scmp.eq.s32.totalorder %s23, 0
      %p151 = por %p149, %p150
      %p152 = scmp.ne.s32.totalorder %s144, %s146
      %p153 = scmp.eq.s32.totalorder %s28, 1
      %p154 = por %p152, %p153
      %p155 = scmp.ne.s32.totalorder %s146, %s147
      %p156 = scmp.eq.s32.totalorder %s28, 0
      %p157 = por %p155, %p156
      %p158 = scmp.ne.s32.totalorder %s146, %s147
      %p159 = scmp.eq.s32.totalorder %s29, 1
      %p160 = por %p158, %p159
      %p162 = scmp.ne.s32.totalorder %s147, %s161
      %p163 = scmp.eq.s32.totalorder %s29, 0
      %p164 = por %p162, %p163
      %s166 = sadd.s32 %s165, 1
      %p169 = scmp.eq.s32.totalorder %s23, 1
      %p170 = scmp.ne.s32.totalorder %s165, %s167
      %p171 = scmp.eq.s32.totalorder %s23, 0
      %p172 = por %p170, %p171
      %p173 = scmp.ne.s32.totalorder %s165, %s167
      %p174 = scmp.eq.s32.totalorder %s28, 1
      %p175 = por %p173, %p174
      %p176 = scmp.ne.s32.totalorder %s167, %s168
      %p177 = scmp.eq.s32.totalorder %s28, 0
      %p178 = por %p176, %p177
      %p179 = scmp.ne.s32.totalorder %s167, %s168
      %p180 = scmp.eq.s32.totalorder %s29, 1
      %p181 = por %p179, %p180
      %p183 = scmp.ne.s32.totalorder %s168, %s182
      %p184 = scmp.eq.s32.totalorder %s29, 0
      %p185 = por %p183, %p184
      %s187 = sadd.s32 %s186, 1
      %p190 = scmp.eq.s32.totalorder %s23, 1
      %p191 = scmp.ne.s32.totalorder %s186, %s188
      %p192 = scmp.eq.s32.totalorder %s23, 0
      %p193 = por %p191, %p192
      %p194 = scmp.ne.s32.totalorder %s186, %s188
      %p195 = scmp.eq.s32.totalorder %s28, 1
      %p196 = por %p194, %p195
      %p197 = scmp.ne.s32.totalorder %s188, %s189
      %p198 = scmp.eq.s32.totalorder %s28, 0
      %p199 = por %p197, %p198
      %p200 = scmp.ne.s32.totalorder %s188, %s189
      %p201 = scmp.eq.s32.totalorder %s29, 1
      %p202 = por %p200, %p201
      %p204 = scmp.ne.s32.totalorder %s189, %s203
      %p205 = scmp.eq.s32.totalorder %s29, 0
      %p206 = por %p204, %p205
      %s207 = ssub.s32 %s30, %s42
      %s208 = ssub.s32 %s31, %s38
      %s209 = sor.u32 %s207, %s208
      %p210 = scmp.eq.s32.totalorder %s209, 0
      %s212 = sadd.s32 %s211, 1
      %s213 = scalar_select %p210, %s211, %s212
      %p216 = pneg %p210
      %p217 = scmp.eq.s32.totalorder %s23, 1
      %p218 = por %p216, %p217
      %p219 = scmp.ne.s32.totalorder %s211, %s214
      %p220 = scmp.eq.s32.totalorder %s23, 0
      %p221 = por %p219, %p220
      %p222 = scmp.ne.s32.totalorder %s211, %s214
      %p223 = scmp.eq.s32.totalorder %s28, 1
      %p224 = por %p222, %p223
      %p225 = scmp.ne.s32.totalorder %s214, %s215
      %p226 = scmp.eq.s32.totalorder %s28, 0
      %p227 = por %p225, %p226
      %p228 = scmp.ne.s32.totalorder %s214, %s215
      %p229 = scmp.eq.s32.totalorder %s29, 1
      %p230 = por %p228, %p229
      %p232 = scmp.ne.s32.totalorder %s215, %s231
      %p233 = scmp.eq.s32.totalorder %s29, 0
      %p234 = por %p232, %p233
      %p235 = scmp.le.s32.totalorder 1, %s23
      %p236 = scmp.lt.s32.totalorder %s23, 3
      %p237 = pnand %p235, %p236
      %p238 = pneg %p237
      // Predicated region
      $region9: #{tpu_custom_call.1} parent=5 // pred_check
        _
      $region10: #{tpu_custom_call.1} parent=5 // pred_check_branch
        %240 = sbr.rel (%p237) target = $region12
      $region11: #{tpu_custom_call.1} parent=5 // pred_region
        %s241 = ssub.s32 %s23, 1
        // Predicated region
        $region13: #{tpu_custom_call.1} parent=11 // pred_check
          %p242 = pneg %p136
        $region14: #{tpu_custom_call.1} parent=11 // pred_check_branch
          %244 = sbr.rel (%p242) target = $region16
        $region15: #{tpu_custom_call.1} parent=11 // pred_region
          %246 = vsyncadd [#allocation11], 0
          %s247 = sshll.u32 %s3, 4
          %s248 = int_to_ptr.hbm [resolvable:$true] %s247
          %s249 = sshll.u32 [#allocation10], 4
          %s250 = int_to_ptr.vmem [resolvable:$true] %s249
          %255 = dma.hbm_to_vmem [thread:$0]  %s248, 1536, %s250, [#allocation11], 128, 128, 8
        $region16: #{tpu_custom_call.1} parent=11 // pred_fallthru
          _
        // Predicated region
        $region17: #{tpu_custom_call.1} parent=11 // pred_check
          %p256 = pneg %p157
        $region18: #{tpu_custom_call.1} parent=11 // pred_check_branch
          %258 = sbr.rel (%p256) target = $region20
        $region19: #{tpu_custom_call.1} parent=11 // pred_region
          _
        $region20: #{tpu_custom_call.1} parent=11 // pred_fallthru
          _
        // Predicated region
        $region21: #{tpu_custom_call.1} parent=11 // pred_check
          %p259 = pneg %p178
        $region22: #{tpu_custom_call.1} parent=11 // pred_check_branch
          %261 = sbr.rel (%p259) target = $region24
        $region23: #{tpu_custom_call.1} parent=11 // pred_region
          %263 = vsyncadd [#allocation11], 0
          %s264 = sshll.u32 %s5, 4
          %s265 = int_to_ptr.hbm [resolvable:$true] %s264
          %s266 = sshll.u32 [#allocation12], 4
          %s267 = int_to_ptr.vmem [resolvable:$true] %s266
          %272 = dma.hbm_to_vmem [thread:$0]  %s265, 512, %s267, [#allocation11], 128, 128, 8
        $region24: #{tpu_custom_call.1} parent=11 // pred_fallthru
          _
        // Predicated region
        $region25: #{tpu_custom_call.1} parent=11 // pred_check
          %p273 = pneg %p199
        $region26: #{tpu_custom_call.1} parent=11 // pred_check_branch
          %275 = sbr.rel (%p273) target = $region28
        $region27: #{tpu_custom_call.1} parent=11 // pred_region
          _
        $region28: #{tpu_custom_call.1} parent=11 // pred_fallthru
          _
      $region12: #{tpu_custom_call.1} parent=5 // pred_fallthru
        _
      %p276 = scmp.lt.s32.totalorder %s23, 2
      // Predicated region
      $region29: #{tpu_custom_call.1} parent=5 // pred_check
        %p277 = pneg %p276
      $region30: #{tpu_custom_call.1} parent=5 // pred_check_branch
        %279 = sbr.rel (%p277) target = $region32
      $region31: #{tpu_custom_call.1} parent=5 // pred_region
        // Predicated region
        $region33: #{tpu_custom_call.1} parent=31 // pred_check
          %p280 = pneg %p57
        $region34: #{tpu_custom_call.1} parent=31 // pred_check_branch
          %282 = sbr.rel (%p280) target = $region36
        $region35: #{tpu_custom_call.1} parent=31 // pred_region
          %s283 = sand.u32 %s47, 1
          %s284 = scalar_lea.sflag [#allocation5], %s283
          %s285 = sand.u32 %s47, 1
          %s286 = smul.addr %s285, 8
          %s287 = scalar_lea.vmem [#allocation4], %s286
          %289 = vsyncadd %s284, 0
          %s290 = sadd.s32 %s31, %s30
          %s291 = smul.addr %s290, 8
          %s292 = scalar_lea.hbm %s0, %s291
          %s294 = sshll.u32 %s292, 4
          %s295 = int_to_ptr.hbm [resolvable:$true] %s294
          %s296 = sshll.u32 %s287, 4
          %s297 = int_to_ptr.vmem [resolvable:$true] %s296
          %299 = dma.hbm_to_vmem [thread:$0]  %s295, 128, %s297, %s284
        $region36: #{tpu_custom_call.1} parent=31 // pred_fallthru
          _
        // Predicated region
        $region37: #{tpu_custom_call.1} parent=31 // pred_check
          %p300 = pneg %p83
        $region38: #{tpu_custom_call.1} parent=31 // pred_check_branch
          %302 = sbr.rel (%p300) target = $region40
        $region39: #{tpu_custom_call.1} parent=31 // pred_region
          %s303 = sand.u32 %s23, 1
          %s304 = scalar_lea.sflag [#allocation8], %s303
          %s305 = sand.u32 %s73, 1
          %s306 = smul.addr %s305, 8
          %s307 = scalar_lea.vmem [#allocation7], %s306
          %309 = vsyncadd %s304, 0
          %s310 = smul.addr %s30, 8
          %s311 = scalar_lea.hbm %s1, %s310
          %s313 = sshll.u32 %s311, 4
          %s314 = int_to_ptr.hbm [resolvable:$true] %s313
          %s315 = sshll.u32 %s307, 4
          %s316 = int_to_ptr.vmem [resolvable:$true] %s315
          %318 = dma.hbm_to_vmem [thread:$0]  %s314, 128, %s316, %s304
        $region40: #{tpu_custom_call.1} parent=31 // pred_fallthru
          _
        // Predicated region
        $region41: #{tpu_custom_call.1} parent=31 // pred_check
          %p319 = pneg %p109
        $region42: #{tpu_custom_call.1} parent=31 // pred_check_branch
          %321 = sbr.rel (%p319) target = $region44
        $region43: #{tpu_custom_call.1} parent=31 // pred_region
          %s322 = sand.u32 %s23, 1
          %s323 = scalar_lea.sflag [#allocation8], %s322
          %s324 = sand.u32 %s99, 1
          %s325 = smul.addr %s324, 8
          %s326 = scalar_lea.vmem [#allocation9], %s325
          %328 = vsyncadd %s323, 0
          %s329 = smul.addr %s30, 8
          %s330 = scalar_lea.hbm %s2, %s329
          %s332 = sshll.u32 %s330, 4
          %s333 = int_to_ptr.hbm [resolvable:$true] %s332
          %s334 = sshll.u32 %s326, 4
          %s335 = int_to_ptr.vmem [resolvable:$true] %s334
          %337 = dma.hbm_to_vmem [thread:$0]  %s333, 128, %s335, %s323
        $region44: #{tpu_custom_call.1} parent=31 // pred_fallthru
          _
      $region32: #{tpu_custom_call.1} parent=5 // pred_fallthru
        _
      %p338 = scmp.le.s32.totalorder 1, %s23
      %p339 = scmp.lt.s32.totalorder %s23, 3
      %p340 = pnand %p338, %p339
      %p341 = pneg %p340
      // Predicated region
      $region45: #{tpu_custom_call.1} parent=5 // pred_check
        _
      $region46: #{tpu_custom_call.1} parent=5 // pred_check_branch
        %343 = sbr.rel (%p340) target = $region48
      $region47: #{tpu_custom_call.1} parent=5 // pred_region
        %s344 = ssub.s32 %s23, 1
        %s345 = sand.u32 %s50, 1
        %s346 = scalar_lea.sflag [#allocation5], %s345
        %s347 = sand.u32 %s50, 1
        %s348 = smul.addr %s347, 8
        %s349 = scalar_lea.vmem [#allocation4], %s348
        // Predicated region
        $region49: #{tpu_custom_call.1} parent=47 // pred_check
          %p350 = pneg %p63
        $region50: #{tpu_custom_call.1} parent=47 // pred_check_branch
          %352 = sbr.rel (%p350) target = $region52
        $region51: #{tpu_custom_call.1} parent=47 // pred_region
          %354 = dma.done %s346, 128
        $region52: #{tpu_custom_call.1} parent=47 // pred_fallthru
          _
        %s355 = sand.u32 %s28, 1
        %s356 = scalar_lea.sflag [#allocation8], %s355
        %s357 = sand.u32 %s76, 1
        %s358 = smul.addr %s357, 8
        %s359 = scalar_lea.vmem [#allocation7], %s358
        // Predicated region
        $region53: #{tpu_custom_call.1} parent=47 // pred_check
          %p360 = pneg %p89
        $region54: #{tpu_custom_call.1} parent=47 // pred_check_branch
          %362 = sbr.rel (%p360) target = $region56
        $region55: #{tpu_custom_call.1} parent=47 // pred_region
          %364 = dma.done %s356, 128
        $region56: #{tpu_custom_call.1} parent=47 // pred_fallthru
          _
        %s365 = sand.u32 %s28, 1
        %s366 = scalar_lea.sflag [#allocation8], %s365
        %s367 = sand.u32 %s102, 1
        %s368 = smul.addr %s367, 8
        %s369 = scalar_lea.vmem [#allocation9], %s368
        // Predicated region
        $region57: #{tpu_custom_call.1} parent=47 // pred_check
          %p370 = pneg %p115
        $region58: #{tpu_custom_call.1} parent=47 // pred_check_branch
          %372 = sbr.rel (%p370) target = $region60
        $region59: #{tpu_custom_call.1} parent=47 // pred_region
          %374 = dma.done %s366, 128
        $region60: #{tpu_custom_call.1} parent=47 // pred_fallthru
          _
        // Predicated region
        $region61: #{tpu_custom_call.1} parent=47 // pred_check
          %p375 = pneg %p136
        $region62: #{tpu_custom_call.1} parent=47 // pred_check_branch
          %377 = sbr.rel (%p375) target = $region64
        $region63: #{tpu_custom_call.1} parent=47 // pred_region
          %379 = dma.done [#allocation11], 1536
        $region64: #{tpu_custom_call.1} parent=47 // pred_fallthru
          _
        // Predicated region
        $region65: #{tpu_custom_call.1} parent=47 // pred_check
          %p380 = pneg %p178
        $region66: #{tpu_custom_call.1} parent=47 // pred_check_branch
          %382 = sbr.rel (%p380) target = $region68
        $region67: #{tpu_custom_call.1} parent=47 // pred_region
          %384 = dma.done [#allocation11], 512
        $region68: #{tpu_custom_call.1} parent=47 // pred_fallthru
          _
        %s385 = sand.u32 %s50, 1
        %s386 = scalar_lea.sflag [#allocation5], %s385
        %s387 = sand.u32 %s50, 1
        %s388 = smul.addr %s387, 8
        %s389 = scalar_lea.vmem [#allocation4], %s388
        %p390 = pneg %p63
        %p391 = pneg %p60
        %s392 = sand.u32 %s28, 1
        %s393 = scalar_lea.sflag [#allocation8], %s392
        %s394 = sand.u32 %s76, 1
        %s395 = smul.addr %s394, 8
        %s396 = scalar_lea.vmem [#allocation7], %s395
        %p397 = pneg %p89
        %p398 = pneg %p86
        %s399 = sand.u32 %s28, 1
        %s400 = scalar_lea.sflag [#allocation8], %s399
        %s401 = sand.u32 %s102, 1
        %s402 = smul.addr %s401, 8
        %s403 = scalar_lea.vmem [#allocation9], %s402
        %p404 = pneg %p115
        %p405 = pneg %p112
        %p406 = pneg %p136
        %p407 = pneg %p133
        %p408 = pneg %p157
        %p409 = pneg %p154
        %p410 = pneg %p178
        %p411 = pneg %p175
        %p412 = pneg %p199
        %p413 = pneg %p196
        %p414 = pneg %p227
        %p415 = pneg %p224
        %s416 = sand.u32 %s214, 1
        %s417 = scalar_lea.sflag [#allocation6], %s416
        %s418 = sand.u32 %s214, 1
        %s419 = smul.addr %s418, 8
        %s420 = scalar_lea.vmem [#allocation13], %s419
        %p421 = scmp.eq.s32.totalorder %s33, 0
        // Predicated region
        $region69: #{tpu_custom_call.1} parent=47 // pred_check
          %p422 = pneg %p421
        $region70: #{tpu_custom_call.1} parent=47 // pred_check_branch
          %424 = sbr.rel (%p422) target = $region72
        $region71: #{tpu_custom_call.1} parent=47 // pred_region
          %v425 = vld [vmem:[%s359] sm:$0xff]
          %s426 = scalar_lea.vmem [#allocation10], 32
          %v427 = vld [vmem:[%s426] sm:$0xff]
          %v428 = vld [vmem:[%s426 + $0x8] sm:$0xff]
          %v429 = vld [vmem:[%s426 + $0x10] sm:$0xff]
          %v430 = vld [vmem:[%s426 + $0x18] sm:$0xff]
          %s431 = scalar_lea.vmem %s4, 1
          %v432 = vld [vmem:[%s431] sm:$0x1]
          %v434 = vperm.slane %v432, 0
          %vm436 = vcmask 261120
          %v438 = vsel %vm436, %v425, 0
          %440 = vmatpush.msra.mxu0 0.0
          %441 = vmatpush.msra.mxu0 0.0
          %442 = vmatpush.msra.mxu0 0.0
          %443 = vmatpush.msra.mxu0 0.0
          %444 = vmatpush.msra.mxu0 0.0
          %445 = vmatpush.msra.mxu0 0.0
          %446 = vmatpush.msra.mxu0 0.0
          %447 = vmatpush.msra.mxu0 0.0
          %448 = vmatpush.msra.mxu0 0.0
          %449 = vmatpush.msra.mxu0 0.0
          %450 = vmatpush.msra.mxu0 0.0
          %451 = vmatpush.msra.mxu0 0.0
          %452 = vmatpush.msra.mxu0 %v430
          %453 = vmatpush.msra.mxu0 %v429
          %454 = vmatpush.msra.mxu0 %v428
          %455 = vmatpush.msra.mxu0 %v427
          %456 = vmatmul.f32.gmra.mxu0 %v438
          %v457 = vpop.f32.mrf.mxu0
          %v458 = vadd.f32 %v434, %v457
          %459 = vdwg.mxu0
          %460 = vst.msk [vmem:[#allocation2] sm:$0xff] %vm436, %v458
          %v461 = vld [vmem:[%s369] sm:$0xff]
          %s462 = scalar_lea.vmem [#allocation10], 64
          %v463 = vld [vmem:[%s462] sm:$0xff]
          %v464 = vld [vmem:[%s462 + $0x8] sm:$0xff]
          %v465 = vld [vmem:[%s462 + $0x10] sm:$0xff]
          %v466 = vld [vmem:[%s462 + $0x18] sm:$0xff]
          %s467 = scalar_lea.vmem %s4, 2
          %v468 = vld [vmem:[%s467] sm:$0x1]
          %v470 = vperm.slane %v468, 0
          %v473 = vsel %vm436, %v461, 0
          %475 = vmatpush.msra.mxu0 0.0
          %476 = vmatpush.msra.mxu0 0.0
          %477 = vmatpush.msra.mxu0 0.0
          %478 = vmatpush.msra.mxu0 0.0
          %479 = vmatpush.msra.mxu0 0.0
          %480 = vmatpush.msra.mxu0 0.0
          %481 = vmatpush.msra.mxu0 0.0
          %482 = vmatpush.msra.mxu0 0.0
          %483 = vmatpush.msra.mxu0 0.0
          %484 = vmatpush.msra.mxu0 0.0
          %485 = vmatpush.msra.mxu0 0.0
          %486 = vmatpush.msra.mxu0 0.0
          %487 = vmatpush.msra.mxu0 %v466
          %488 = vmatpush.msra.mxu0 %v465
          %489 = vmatpush.msra.mxu0 %v464
          %490 = vmatpush.msra.mxu0 %v463
          %491 = vmatmul.f32.gmra.mxu0 %v473
          %v492 = vpop.f32.mrf.mxu0
          %v493 = vadd.f32 %v470, %v492
          %494 = vdwg.mxu0
          %495 = vst.msk [vmem:[#allocation3] sm:$0xff] %vm436, %v493
        $region72: #{tpu_custom_call.1} parent=47 // pred_fallthru
          _
        %v496 = vld [vmem:[%s349] sm:$0xff]
        %v497 = vld [vmem:[#allocation10] sm:$0xff]
        %v498 = vld [vmem:[#allocation10 + $0x8] sm:$0xff]
        %v499 = vld [vmem:[#allocation10 + $0x10] sm:$0xff]
        %v500 = vld [vmem:[#allocation10 + $0x18] sm:$0xff]
        %v501 = vld [vmem:[%s4] sm:$0x1]
        %v503 = vperm.slane %v501, 0
        %vm505 = vcmask 261120
        %v507 = vsel %vm505, %v496, 0
        %509 = vmatpush.msra.mxu0 0.0
        %510 = vmatpush.msra.mxu0 0.0
        %511 = vmatpush.msra.mxu0 0.0
        %512 = vmatpush.msra.mxu0 0.0
        %513 = vmatpush.msra.mxu0 0.0
        %514 = vmatpush.msra.mxu0 0.0
        %515 = vmatpush.msra.mxu0 0.0
        %516 = vmatpush.msra.mxu0 0.0
        %517 = vmatpush.msra.mxu0 0.0
        %518 = vmatpush.msra.mxu0 0.0
        %519 = vmatpush.msra.mxu0 0.0
        %520 = vmatpush.msra.mxu0 0.0
        %521 = vmatpush.msra.mxu0 %v500
        %522 = vmatpush.msra.mxu0 %v499
        %523 = vmatpush.msra.mxu0 %v498
        %524 = vmatpush.msra.mxu0 %v497
        %525 = vmatmul.f32.gmra.mxu0 %v507
        %v526 = vpop.f32.mrf.mxu0
        %v527 = vadd.f32 %v503, %v526
        %528 = vdwg.mxu0
        %v529 = vld [vmem:[#allocation2] sm:$0xff]
        %v530 = vld [vmem:[#allocation3] sm:$0xff]
        %vm531 = vcmask 64512
        %v533 = vsel %vm531, %v527, 0
        %v536 = vsel %vm531, %v529, 0
        %538 = vmatpush.xpose.msra.mxu0 0.0
        %539 = vmatpush.xpose.msra.mxu0 0.0
        %540 = vmatpush.xpose.msra.mxu0 0.0
        %541 = vmatpush.xpose.msra.mxu0 0.0
        %542 = vmatpush.xpose.msra.mxu0 0.0
        %543 = vmatpush.xpose.msra.mxu0 0.0
        %544 = vmatpush.xpose.msra.mxu0 0.0
        %545 = vmatpush.xpose.msra.mxu0 0.0
        %546 = vmatpush.xpose.msra.mxu0 0.0
        %547 = vmatpush.xpose.msra.mxu0 0.0
        %548 = vmatpush.xpose.msra.mxu0 0.0
        %549 = vmatpush.xpose.msra.mxu0 0.0
        %550 = vmatpush.xpose.msra.mxu0 0.0
        %551 = vmatpush.xpose.msra.mxu0 0.0
        %552 = vmatpush.xpose.msra.mxu0 0.0
        %553 = vmatpush.xpose.msra.mxu0 %v536
        %554 = vmatmul.f32.gmra.mxu0 %v533
        %v555 = vpop.f32.mrf.mxu0
        %v556 = vadd.f32 0.0, %v555
        %557 = vdwg.mxu0
        %v558 = vsel %vm531, %v556, -inf
        %559 = vmax.xlane.f32.xlu0 %v558
        %v560 = vpop.xlane.xlu0 %559
        %v561 = vsub.f32 %v556, %v560
        %v562 = vmul.f32 %v561, 1.442695
        %v563 = vpow.pop %v562
        %v564 = vsel %vm531, %v563, 0.0
        %565 = vadd.xlane.f32.xlu0 %v564
        %v566 = vpop.xlane.xlu0 %565
        %v568 = vsel %vm531, %v563, 0
        %570 = vmatpush.msra.mxu0 0.0
        %571 = vmatpush.msra.mxu0 0.0
        %572 = vmatpush.msra.mxu0 0.0
        %573 = vmatpush.msra.mxu0 0.0
        %574 = vmatpush.msra.mxu0 0.0
        %575 = vmatpush.msra.mxu0 0.0
        %576 = vmatpush.msra.mxu0 0.0
        %577 = vmatpush.msra.mxu0 0.0
        %578 = vmatpush.msra.mxu0 0.0
        %579 = vmatpush.msra.mxu0 0.0
        %580 = vmatpush.msra.mxu0 0.0
        %581 = vmatpush.msra.mxu0 0.0
        %582 = vmatpush.msra.mxu0 0.0
        %583 = vmatpush.msra.mxu0 0.0
        %584 = vmatpush.msra.mxu0 0.0
        %585 = vmatpush.msra.mxu0 %v530
        %586 = vmatmul.f32.gmra.mxu0 %v568
        %v587 = vpop.f32.mrf.mxu0
        %v588 = vadd.f32 0.0, %v587
        %589 = vdwg.mxu0
        %v590 = vrcp.pop %v566
        %v591 = vmul.f32 %v566, %v590
        %v592 = vsub.f32 2.0, %v591
        %v593 = vmul.f32 %v590, %v592
        %v594 = vmul.f32 %v588, %v593
        %595 = vrot.lane.b32.xlu0 %v527, 120
        %v596 = vpop.permute.xlu0 %595
        %597 = vrot.lane.b32.xlu0 %v529, 120
        %v598 = vpop.permute.xlu0 %597
        %v599 = vsel %vm531, %v596, 0
        %v601 = vsel %vm531, %v598, 0
        %603 = vmatpush.xpose.msra.mxu0 0.0
        %604 = vmatpush.xpose.msra.mxu0 0.0
        %605 = vmatpush.xpose.msra.mxu0 0.0
        %606 = vmatpush.xpose.msra.mxu0 0.0
        %607 = vmatpush.xpose.msra.mxu0 0.0
        %608 = vmatpush.xpose.msra.mxu0 0.0
        %609 = vmatpush.xpose.msra.mxu0 0.0
        %610 = vmatpush.xpose.msra.mxu0 0.0
        %611 = vmatpush.xpose.msra.mxu0 0.0
        %612 = vmatpush.xpose.msra.mxu0 0.0
        %613 = vmatpush.xpose.msra.mxu0 0.0
        %614 = vmatpush.xpose.msra.mxu0 0.0
        %615 = vmatpush.xpose.msra.mxu0 0.0
        %616 = vmatpush.xpose.msra.mxu0 0.0
        %617 = vmatpush.xpose.msra.mxu0 0.0
        %618 = vmatpush.xpose.msra.mxu0 %v601
        %619 = vmatmul.f32.gmra.mxu0 %v599
        %v620 = vpop.f32.mrf.mxu0
        %v621 = vadd.f32 0.0, %v620
        %622 = vdwg.mxu0
        %v623 = vsel %vm531, %v621, -inf
        %624 = vmax.xlane.f32.xlu0 %v623
        %v625 = vpop.xlane.xlu0 %624
        %v626 = vsub.f32 %v621, %v625
        %v627 = vmul.f32 %v626, 1.442695
        %v628 = vpow.pop %v627
        %v629 = vsel %vm531, %v628, 0.0
        %630 = vadd.xlane.f32.xlu0 %v629
        %v631 = vpop.xlane.xlu0 %630
        %633 = vrot.lane.b32.xlu0 %v530, 120
        %v634 = vpop.permute.xlu0 %633
        %v637 = vsel %vm531, %v628, 0
        %639 = vmatpush.msra.mxu0 0.0
        %640 = vmatpush.msra.mxu0 0.0
        %641 = vmatpush.msra.mxu0 0.0
        %642 = vmatpush.msra.mxu0 0.0
        %643 = vmatpush.msra.mxu0 0.0
        %644 = vmatpush.msra.mxu0 0.0
        %645 = vmatpush.msra.mxu0 0.0
        %646 = vmatpush.msra.mxu0 0.0
        %647 = vmatpush.msra.mxu0 0.0
        %648 = vmatpush.msra.mxu0 0.0
        %649 = vmatpush.msra.mxu0 0.0
        %650 = vmatpush.msra.mxu0 0.0
        %651 = vmatpush.msra.mxu0 0.0
        %652 = vmatpush.msra.mxu0 0.0
        %653 = vmatpush.msra.mxu0 0.0
        %654 = vmatpush.msra.mxu0 %v634
        %655 = vmatmul.f32.gmra.mxu0 %v637
        %v656 = vpop.f32.mrf.mxu0
        %v657 = vadd.f32 0.0, %v656
        %658 = vdwg.mxu0
        %v659 = vrcp.pop %v631
        %v660 = vmul.f32 %v631, %v659
        %v661 = vsub.f32 2.0, %v660
        %v662 = vmul.f32 %v659, %v661
        %v663 = vmul.f32 %v657, %v662
        %664 = vrot.lane.b32.xlu0 %v527, 112
        %v665 = vpop.permute.xlu0 %664
        %666 = vrot.lane.b32.xlu0 %v529, 112
        %v667 = vpop.permute.xlu0 %666
        %v668 = vsel %vm531, %v665, 0
        %v670 = vsel %vm531, %v667, 0
        %672 = vmatpush.xpose.msra.mxu0 0.0
        %673 = vmatpush.xpose.msra.mxu0 0.0
        %674 = vmatpush.xpose.msra.mxu0 0.0
        %675 = vmatpush.xpose.msra.mxu0 0.0
        %676 = vmatpush.xpose.msra.mxu0 0.0
        %677 = vmatpush.xpose.msra.mxu0 0.0
        %678 = vmatpush.xpose.msra.mxu0 0.0
        %679 = vmatpush.xpose.msra.mxu0 0.0
        %680 = vmatpush.xpose.msra.mxu0 0.0
        %681 = vmatpush.xpose.msra.mxu0 0.0
        %682 = vmatpush.xpose.msra.mxu0 0.0
        %683 = vmatpush.xpose.msra.mxu0 0.0
        %684 = vmatpush.xpose.msra.mxu0 0.0
        %685 = vmatpush.xpose.msra.mxu0 0.0
        %686 = vmatpush.xpose.msra.mxu0 0.0
        %687 = vmatpush.xpose.msra.mxu0 %v670
        %688 = vmatmul.f32.gmra.mxu0 %v668
        %v689 = vpop.f32.mrf.mxu0
        %v690 = vadd.f32 0.0, %v689
        %691 = vdwg.mxu0
        %v692 = vsel %vm531, %v690, -inf
        %693 = vmax.xlane.f32.xlu0 %v692
        %v694 = vpop.xlane.xlu0 %693
        %v695 = vsub.f32 %v690, %v694
        %v696 = vmul.f32 %v695, 1.442695
        %v697 = vpow.pop %v696
        %v698 = vsel %vm531, %v697, 0.0
        %699 = vadd.xlane.f32.xlu0 %v698
        %v700 = vpop.xlane.xlu0 %699
        %701 = vrot.lane.b32.xlu0 %v530, 112
        %v702 = vpop.permute.xlu0 %701
        %v705 = vsel %vm531, %v697, 0
        %707 = vmatpush.msra.mxu0 0.0
        %708 = vmatpush.msra.mxu0 0.0
        %709 = vmatpush.msra.mxu0 0.0
        %710 = vmatpush.msra.mxu0 0.0
        %711 = vmatpush.msra.mxu0 0.0
        %712 = vmatpush.msra.mxu0 0.0
        %713 = vmatpush.msra.mxu0 0.0
        %714 = vmatpush.msra.mxu0 0.0
        %715 = vmatpush.msra.mxu0 0.0
        %716 = vmatpush.msra.mxu0 0.0
        %717 = vmatpush.msra.mxu0 0.0
        %718 = vmatpush.msra.mxu0 0.0
        %719 = vmatpush.msra.mxu0 0.0
        %720 = vmatpush.msra.mxu0 0.0
        %721 = vmatpush.msra.mxu0 0.0
        %722 = vmatpush.msra.mxu0 %v702
        %723 = vmatmul.f32.gmra.mxu0 %v705
        %v724 = vpop.f32.mrf.mxu0
        %v725 = vadd.f32 0.0, %v724
        %726 = vdwg.mxu0
        %v727 = vrcp.pop %v700
        %v728 = vmul.f32 %v700, %v727
        %v729 = vsub.f32 2.0, %v728
        %v730 = vmul.f32 %v727, %v729
        %v731 = vmul.f32 %v725, %v730
        %732 = vrot.lane.b32.xlu0 %v527, 104
        %v733 = vpop.permute.xlu0 %732
        %734 = vrot.lane.b32.xlu0 %v529, 104
        %v735 = vpop.permute.xlu0 %734
        %v736 = vsel %vm531, %v733, 0
        %v738 = vsel %vm531, %v735, 0
        %740 = vmatpush.xpose.msra.mxu0 0.0
        %741 = vmatpush.xpose.msra.mxu0 0.0
        %742 = vmatpush.xpose.msra.mxu0 0.0
        %743 = vmatpush.xpose.msra.mxu0 0.0
        %744 = vmatpush.xpose.msra.mxu0 0.0
        %745 = vmatpush.xpose.msra.mxu0 0.0
        %746 = vmatpush.xpose.msra.mxu0 0.0
        %747 = vmatpush.xpose.msra.mxu0 0.0
        %748 = vmatpush.xpose.msra.mxu0 0.0
        %749 = vmatpush.xpose.msra.mxu0 0.0
        %750 = vmatpush.xpose.msra.mxu0 0.0
        %751 = vmatpush.xpose.msra.mxu0 0.0
        %752 = vmatpush.xpose.msra.mxu0 0.0
        %753 = vmatpush.xpose.msra.mxu0 0.0
        %754 = vmatpush.xpose.msra.mxu0 0.0
        %755 = vmatpush.xpose.msra.mxu0 %v738
        %756 = vmatmul.f32.gmra.mxu0 %v736
        %v757 = vpop.f32.mrf.mxu0
        %v758 = vadd.f32 0.0, %v757
        %759 = vdwg.mxu0
        %v760 = vsel %vm531, %v758, -inf
        %761 = vmax.xlane.f32.xlu0 %v760
        %v762 = vpop.xlane.xlu0 %761
        %v763 = vsub.f32 %v758, %v762
        %v764 = vmul.f32 %v763, 1.442695
        %v765 = vpow.pop %v764
        %v766 = vsel %vm531, %v765, 0.0
        %767 = vadd.xlane.f32.xlu0 %v766
        %v768 = vpop.xlane.xlu0 %767
        %769 = vrot.lane.b32.xlu0 %v530, 104
        %v770 = vpop.permute.xlu0 %769
        %v773 = vsel %vm531, %v765, 0
        %775 = vmatpush.msra.mxu0 0.0
        %776 = vmatpush.msra.mxu0 0.0
        %777 = vmatpush.msra.mxu0 0.0
        %778 = vmatpush.msra.mxu0 0.0
        %779 = vmatpush.msra.mxu0 0.0
        %780 = vmatpush.msra.mxu0 0.0
        %781 = vmatpush.msra.mxu0 0.0
        %782 = vmatpush.msra.mxu0 0.0
        %783 = vmatpush.msra.mxu0 0.0
        %784 = vmatpush.msra.mxu0 0.0
        %785 = vmatpush.msra.mxu0 0.0
        %786 = vmatpush.msra.mxu0 0.0
        %787 = vmatpush.msra.mxu0 0.0
        %788 = vmatpush.msra.mxu0 0.0
        %789 = vmatpush.msra.mxu0 0.0
        %790 = vmatpush.msra.mxu0 %v770
        %791 = vmatmul.f32.gmra.mxu0 %v773
        %v792 = vpop.f32.mrf.mxu0
        %v793 = vadd.f32 0.0, %v792
        %794 = vdwg.mxu0
        %v795 = vrcp.pop %v768
        %v796 = vmul.f32 %v768, %v795
        %v797 = vsub.f32 2.0, %v796
        %v798 = vmul.f32 %v795, %v797
        %v799 = vmul.f32 %v793, %v798
        %801 = vrot.lane.b32.xlu0 %v663, 8
        %v802 = vpop.permute.xlu0 %801
        %805 = vrot.lane.b32.xlu0 %v731, 16
        %v806 = vpop.permute.xlu0 %805
        %809 = vrot.lane.b32.xlu0 %v799, 24
        %v810 = vpop.permute.xlu0 %809
        %v812 = vsel %vm531, %v594, %v802
        %vm813 = vcmask 130048
        %v814 = vsel %vm813, %v812, %v806
        %vm815 = vcmask 195584
        %v816 = vsel %vm815, %v814, %v810
        %v817 = vld [vmem:[#allocation12] sm:$0xff]
        %v818 = vld [vmem:[#allocation12 + $0x8] sm:$0xff]
        %v819 = vld [vmem:[#allocation12 + $0x10] sm:$0xff]
        %v820 = vld [vmem:[#allocation12 + $0x18] sm:$0xff]
        %v821 = vld [vmem:[%s6] sm:$0x1]
        %v823 = vperm.slane %v821, 0
        %v826 = vsel %vm505, %v816, 0
        %828 = vmatpush.msra.mxu0 0.0
        %829 = vmatpush.msra.mxu0 0.0
        %830 = vmatpush.msra.mxu0 0.0
        %831 = vmatpush.msra.mxu0 0.0
        %832 = vmatpush.msra.mxu0 0.0
        %833 = vmatpush.msra.mxu0 0.0
        %834 = vmatpush.msra.mxu0 0.0
        %835 = vmatpush.msra.mxu0 0.0
        %836 = vmatpush.msra.mxu0 0.0
        %837 = vmatpush.msra.mxu0 0.0
        %838 = vmatpush.msra.mxu0 0.0
        %839 = vmatpush.msra.mxu0 0.0
        %840 = vmatpush.msra.mxu0 %v820
        %841 = vmatpush.msra.mxu0 %v819
        %842 = vmatpush.msra.mxu0 %v818
        %843 = vmatpush.msra.mxu0 %v817
        %844 = vmatmul.f32.gmra.mxu0 %v826
        %v845 = vpop.f32.mrf.mxu0
        %v846 = vadd.f32 %v823, %v845
        %847 = vdwg.mxu0
        %848 = vst.msk [vmem:[%s420] sm:$0xff] %vm505, %v846
        %s849 = sand.u32 %s214, 1
        %s850 = scalar_lea.sflag [#allocation6], %s849
        %s851 = sand.u32 %s214, 1
        %s852 = smul.addr %s851, 8
        %s853 = scalar_lea.vmem [#allocation13], %s852
        // Predicated region
        $region73: #{tpu_custom_call.1} parent=47 // pred_check
          %p854 = pneg %p224
        $region74: #{tpu_custom_call.1} parent=47 // pred_check_branch
          %856 = sbr.rel (%p854) target = $region76
        $region75: #{tpu_custom_call.1} parent=47 // pred_region
          %858 = vsyncadd %s850, 0
          %s859 = sadd.s32 %s33, %s32
          %s860 = smul.addr %s859, 8
          %s861 = scalar_lea.hbm %s7, %s860
          %s863 = sshll.u32 %s853, 4
          %s864 = int_to_ptr.vmem [resolvable:$true] %s863
          %s865 = sshll.u32 %s861, 4
          %s866 = int_to_ptr.hbm [resolvable:$true] %s865
          %868 = dma.vmem_to_hbm [thread:$0]  %s864, 128, %s866, %s850
        $region76: #{tpu_custom_call.1} parent=47 // pred_fallthru
          _
      $region48: #{tpu_custom_call.1} parent=5 // pred_fallthru
        _
      %p869 = scmp.le.s32.totalorder 2, %s23
      // Predicated region
      $region77: #{tpu_custom_call.1} parent=5 // pred_check
        %p870 = pneg %p869
      $region78: #{tpu_custom_call.1} parent=5 // pred_check_branch
        %872 = sbr.rel (%p870) target = $region80
      $region79: #{tpu_custom_call.1} parent=5 // pred_region
        %s873 = ssub.s32 %s23, 2
        // Predicated region
        $region81: #{tpu_custom_call.1} parent=79 // pred_check
          %p874 = pneg %p230
        $region82: #{tpu_custom_call.1} parent=79 // pred_check_branch
          %876 = sbr.rel (%p874) target = $region84
        $region83: #{tpu_custom_call.1} parent=79 // pred_region
          %s877 = sand.u32 %s215, 1
          %s878 = scalar_lea.sflag [#allocation6], %s877
          %s879 = sand.u32 %s215, 1
          %s880 = smul.addr %s879, 8
          %s881 = scalar_lea.vmem [#allocation13], %s880
          %883 = dma.done %s878, 128
        $region84: #{tpu_custom_call.1} parent=79 // pred_fallthru
          _
      $region80: #{tpu_custom_call.1} parent=5 // pred_fallthru
        _
    $region6: #{tpu_custom_call.1} parent=1 // loop_footer
      %s27 = sadd.s32 1, %s23
    $region7: #{tpu_custom_call.1} parent=1 // loop_footer_branch
      %22 = sbr.rel target = $region3
    $region8: #{tpu_custom_call.1} parent=1 // loop_exit
      _
    %884 = vsyncpa [#allocation5], 1
    %s885 = scalar_lea.sflag [#allocation5], 1
    %886 = vsyncpa %s885, 1
    %887 = vsyncpa [#allocation8], 1
    %s888 = scalar_lea.sflag [#allocation8], 1
    %889 = vsyncpa %s888, 1
    %890 = vsyncpa [#allocation11], 1
    %891 = vsyncpa [#allocation6], 1
    %s892 = scalar_lea.sflag [#allocation6], 1
    %893 = vsyncpa %s892, 1

</llo_original>
